<compile_context>
chip_gen: v7x
topology: tpu7x:2x2x1
jax: 0.10.0
libtpu: 0.0.40
codegen_flags: <defaults>
</compile_context>

<pallas_src>
import jax
import jax.numpy as jnp
from jax.experimental import pallas as pl
from jax.experimental.pallas import tpu as pltpu


def _round_up(v, m):
    return (v + m - 1) // m * m


def _cdiv(a, b):
    return (a + b - 1) // b


def _vmem_cap_bytes():
    """Physical VMEM per core; conservative 64 MiB (v7x) fallback."""
    try:
        cap = getattr(pltpu.get_tpu_info(), "vmem_capacity_bytes", None)
        if cap:
            return int(cap)
    except Exception:
        pass
    return 64 * 1024 * 1024


def _vmem_limit(need_bytes, cap_bytes):
    limit = int(need_bytes * 1.5) + (4 << 20)
    limit = max(limit, 32 << 20)
    return int(min(limit, int(cap_bytes * 0.9)))


def _choose_tiles(n, c, num_graphs, node_tile):
    # Graph tiles: balanced tiles of at most 256 rows.  x is re-streamed only
    # ceil(B/256) times and the one-hot matmul intensity (~tb/2 flops/byte)
    # stays well under the MXU ridge on v5e/v6e/v7x.
    ng = max(int(num_graphs), 1)
    b_tiles = max(1, _cdiv(ng, 256))
    tb = _round_up(_cdiv(ng, b_tiles), 8)
    b_pad = tb * b_tiles

    # Node tiles: target ~4 MiB of x per tile (Pallas double-buffers it),
    # capped by the (tb, tn) one-hot temporaries.  VMEM storage of a (tn, c)
    # f32 block is tn * round_up(c, 128) * 4 bytes ((8, 128) tiling).
    n8 = _round_up(max(n, 1), 8)
    if node_tile is None:
        row_store = _round_up(c, 128) * 4
        tn = min((4 << 20) // row_store, (6 << 20) // (12 * tb), 16384)
        tn = max(128, (tn // 128) * 128)
    else:
        tn = max(128, _round_up(int(node_tile), 128))
    if n8 <= tn:
        tn = n8                                   # single node tile
    return tb, b_pad, b_tiles, int(tn)


def mlp_pooling(x, batch, weight, bias, num_graphs, *, node_tile=None, node_splits=1):
    """global_mean_pool(x, batch) -> Linear(weight, bias) -> ReLU.

    x: (N, C) float, batch: (N,) int graph ids, weight: (H, C) (PyTorch layout),
    bias: (H,).  Returns (num_graphs, H) float32.  Nodes with batch id outside
    [0, num_graphs) are dropped; empty graphs give relu(bias) like the dense
    reference.  node_splits=2 shards the node stream across both TensorCores of
    a v7x chip (safe, just serialized, on single-core parts).
    """
    n, c = x.shape
    h = weight.shape[0]
    num_graphs = int(num_graphs)
    x_dtype = x.dtype

    tb, b_pad, b_tiles, tn = _choose_tiles(n, c, num_graphs, node_tile)
    h_pad = _round_up(h, 128)

    n_tiles_real = _cdiv(max(n, 1), tn)
    node_splits = max(1, min(int(node_splits), n_tiles_real))
    n_pad = _round_up(max(n, 1), tn * node_splits)
    n_tiles = n_pad // tn
    rem = n % tn                       # valid rows in the partial (last real) tile

    # Small padded side inputs; x itself is passed through untouched.
    batch_p = jnp.full((1, n_pad), -1, jnp.int32).at[0, :n].set(batch.astype(jnp.int32))
    w_p = jnp.zeros((c, h_pad), jnp.float32).at[:, :h].set(weight.astype(jnp.float32).T)
    b_p = jnp.zeros((1, h_pad), jnp.float32).at[0, :h].set(bias.astype(jnp.float32))

    vmem_cap = _vmem_cap_bytes()
    c_store = _round_up(c, 128)

    def accumulate(seg, x_tile, graph_base, acc_ref, cnt_ref):
        # One-hot segment matmul on the MXU (f32 accumulation); per-graph node
        # counts via a lane reduction of the same one-hot tile.
        gids = graph_base + jax.lax.broadcasted_iota(jnp.int32, (tb, 1), 0)
        onehot = (gids == seg).astype(jnp.float32)                  # (tb, tn)
        acc_ref[...] += jnp.dot(onehot, x_tile, preferred_element_type=jnp.float32)
        cnt_ref[...] += jnp.sum(onehot, axis=-1, keepdims=True)

    def zero_oob_rows(x_ref):
        # Rows of the last real node tile beyond N are never written by the
        # block DMA (partial block); zero them in VMEM so garbage (possibly
        # NaN/Inf) never reaches the MXU.  Input refs are mutable VMEM buffers.
        x_ref[pl.ds(rem, tn - rem), :] = jnp.zeros((tn - rem, c), x_dtype)

    # ------------------------------------------------------------------ fused
    if node_splits == 1:
        def kernel(batch_ref, x_ref, w_ref, bias_ref, o_ref, acc_ref, cnt_ref):
            nb = pl.program_id(0)
            kn = pl.program_id(1)

            @pl.when(kn == 0)
            def _init():
                acc_ref[...] = jnp.zeros_like(acc_ref)
                cnt_ref[...] = jnp.zeros_like(cnt_ref)

            if rem:
                @pl.when(kn == n_tiles - 1)
                def _zero_tail():
                    zero_oob_rows(x_ref)

            accumulate(batch_ref[...], x_ref[...], nb * tb, acc_ref, cnt_ref)

            @pl.when(kn == n_tiles - 1)
            def _finalize():
                counts = jnp.maximum(cnt_ref[...], 1.0)     # empty-graph guard
                pooled = acc_ref[...] / counts               # exact mean
                y = jnp.dot(pooled, w_ref[...],
                            preferred_element_type=jnp.float32) + bias_ref[...]
                o_ref[...] = jnp.maximum(y, 0.0)

        need = (2 * tn * c_store * 4                 # x blocks (double-buffered)
                + 2 * (tn // 128 + 1) * 4096         # batch-id blocks
                + 2 * _round_up(c, 8) * h_pad * 4    # weight
                + 2 * 8 * h_pad * 4                  # bias
                + 2 * tb * h_pad * 4                 # output block
                + tb * (c_store + 128) * 4           # accumulator + count scratch
                + 3 * tb * tn * 4)                   # one-hot temporaries
        out = pl.pallas_call(
            kernel,
            out_shape=jax.ShapeDtypeStruct((b_pad, h_pad), jnp.float32),
            grid=(b_tiles, n_tiles),
            in_specs=[
                pl.BlockSpec((1, tn), lambda nb, kn: (0, kn)),
                pl.BlockSpec((tn, c), lambda nb, kn: (kn, 0)),
                pl.BlockSpec((c, h_pad), lambda nb, kn: (0, 0)),
                pl.BlockSpec((1, h_pad), lambda nb, kn: (0, 0)),
            ],
            out_specs=pl.BlockSpec((tb, h_pad), lambda nb, kn: (nb, 0)),
            scratch_shapes=[pltpu.VMEM((tb, c), jnp.float32),
                            pltpu.VMEM((tb, 1), jnp.float32)],
            compiler_params=pltpu.CompilerParams(
                dimension_semantics=("parallel", "arbitrary"),
                vmem_limit_bytes=_vmem_limit(need, vmem_cap)),
        )(batch_p, x, w_p, b_p)
        return out[:num_graphs, :h]

    # ------------------------------------------------- node-split (v7x 2 TCs)
    tps = n_tiles // node_splits
    last_real = n_tiles_real - 1

    def partial_kernel(batch_ref, x_ref, ps_ref, pc_ref, acc_ref, cnt_ref):
        s = pl.program_id(0)
        nb = pl.program_id(1)
        kn = pl.program_id(2)
        g = s * tps + kn                              # global node-tile index

        @pl.when(kn == 0)
        def _init():
            acc_ref[...] = jnp.zeros_like(acc_ref)
            cnt_ref[...] = jnp.zeros_like(cnt_ref)

        if rem:
            @pl.when(g >= last_real)
            def _zero_tail():
                zero_oob_rows(x_ref)

        accumulate(batch_ref[...], x_ref[...], nb * tb, acc_ref, cnt_ref)

        @pl.when(kn == tps - 1)
        def _finalize():
            ps_ref[...] = acc_ref[...]
            pc_ref[...] = cnt_ref[...]

    need_p = (2 * tn * c_store * 4
              + 2 * (tn // 128 + 1) * 4096
              + 4 * tb * (c_store + 128) * 4          # partial outputs + scratch
              + 3 * tb * tn * 4)
    psums, pcnts = pl.pallas_call(
        partial_kernel,
        out_shape=(jax.ShapeDtypeStruct((node_splits, b_pad, c), jnp.float32),
                   jax.ShapeDtypeStruct((node_splits, b_pad, 1), jnp.float32)),
        grid=(node_splits, b_tiles, tps),
        in_specs=[
            pl.BlockSpec((1, tn), lambda s, nb, kn: (0, s * tps + kn)),
            # Overhanging padded node tiles re-read the last real tile; their
            # batch ids are -1, so they contribute exactly zero.
            pl.BlockSpec((tn, c),
                         lambda s, nb, kn: (jnp.minimum(s * tps + kn, last_real), 0)),
        ],
        out_specs=(
            pl.BlockSpec((None, tb, c), lambda s, nb, kn: (s, nb, 0)),
            pl.BlockSpec((None, tb, 1), lambda s, nb, kn: (s, nb, 0)),
        ),
        scratch_shapes=[pltpu.VMEM((tb, c), jnp.float32),
                        pltpu.VMEM((tb, 1), jnp.float32)],
        compiler_params=pltpu.CompilerParams(
            dimension_semantics=("parallel", "parallel", "arbitrary"),
            vmem_limit_bytes=_vmem_limit(need_p, vmem_cap)),
    )(batch_p, x)

    def combine_kernel(ps_ref, pc_ref, w_ref, bias_ref, o_ref):
        sums = jnp.sum(ps_ref[...], axis=0)                        # (tb, c)
        counts = jnp.maximum(jnp.sum(pc_ref[...], axis=0), 1.0)    # (tb, 1)
        pooled = sums / counts
        y = jnp.dot(pooled, w_ref[...],
                    preferred_element_type=jnp.float32) + bias_ref[...]
        o_ref[...] = jnp.maximum(y, 0.0)

    need_c = (2 * node_splits * tb * (c_store + 128) * 4
              + 2 * _round_up(c, 8) * h_pad * 4
              + 2 * 8 * h_pad * 4
              + 2 * tb * h_pad * 4)
    out = pl.pallas_call(
        combine_kernel,
        out_shape=jax.ShapeDtypeStruct((b_pad, h_pad), jnp.float32),
        grid=(b_tiles,),
        in_specs=[
            pl.BlockSpec((node_splits, tb, c), lambda nb: (0, nb, 0)),
            pl.BlockSpec((node_splits, tb, 1), lambda nb: (0, nb, 0)),
            pl.BlockSpec((c, h_pad), lambda nb: (0, 0)),
            pl.BlockSpec((1, h_pad), lambda nb: (0, 0)),
        ],
        out_specs=pl.BlockSpec((tb, h_pad), lambda nb: (nb, 0)),
        compiler_params=pltpu.CompilerParams(
            dimension_semantics=("parallel",),
            vmem_limit_bytes=_vmem_limit(need_c, vmem_cap)),
    )(psums, pcnts, w_p, b_p)
    return out[:num_graphs, :h]


def ref_mlp_pooling(x, batch, weight, bias, num_graphs):
    onehot = (batch[None, :] == jnp.arange(num_graphs)[:, None]).astype(jnp.float32)
    counts = jnp.maximum(onehot.sum(1, keepdims=True), 1.0)
    pooled = (onehot @ x.astype(jnp.float32)) / counts
    return jnp.maximum(pooled @ weight.T + bias, 0.0)


if __name__ == "__main__":
    key = jax.random.PRNGKey(0)
    k_x, k_w, k_b, k_x2, k_bt2, k_w2, k_bb2 = jax.random.split(key, 7)

    # Test 1: module-sized example (N=8 nodes, in=4, hidden=32, B=2 graphs).
    N, C, H, B = 8, 4, 32, 2
    x = jax.random.normal(k_x, (N, C), dtype=jnp.float32)
    batch = jnp.array([0, 0, 0, 0, 1, 1, 1, 1], dtype=jnp.int32)
    bound = 1.0 / jnp.sqrt(jnp.float32(C))
    weight = jax.random.uniform(k_w, (H, C), minval=-bound, maxval=bound,
                                dtype=jnp.float32)
    bias = jax.random.uniform(k_b, (H,), minval=-bound, maxval=bound,
                              dtype=jnp.float32)

    out = jax.block_until_ready(mlp_pooling(x, batch, weight, bias, B))
    ref = ref_mlp_pooling(x, batch, weight, bias, B)
    assert out.shape == (B, H)
    assert jnp.allclose(out, ref, atol=2e-2, rtol=2e-2), "mismatch vs reference (test 1)"

    # Test 2: multi-tile node reduction with a partial last tile (exercises the
    # tiled grid, f32 accumulator and in-kernel tail zeroing).
    N2, C2, H2, B2 = 300, 12, 40, 5
    x2 = jax.random.normal(k_x2, (N2, C2), dtype=jnp.float32)
    batch2 = jax.random.randint(k_bt2, (N2,), 0, B2, dtype=jnp.int32)
    bound2 = 1.0 / jnp.sqrt(jnp.float32(C2))
    weight2 = jax.random.uniform(k_w2, (H2, C2), minval=-bound2, maxval=bound2,
                                 dtype=jnp.float32)
    bias2 = jax.random.uniform(k_bb2, (H2,), minval=-bound2, maxval=bound2,
                               dtype=jnp.float32)

    out2 = jax.block_until_ready(
        mlp_pooling(x2, batch2, weight2, bias2, B2, node_tile=128))
    ref2 = ref_mlp_pooling(x2, batch2, weight2, bias2, B2)
    assert out2.shape == (B2, H2)
    assert jnp.allclose(out2, ref2, atol=2e-2, rtol=2e-2), "mismatch vs reference (test 2)"

    # Test 3: node_splits=2 (v7x dual-TensorCore path: partial segment sums +
    # tiny combine kernel).  Runs serialized but correct on single-core parts.
    out3 = jax.block_until_ready(
        mlp_pooling(x2, batch2, weight2, bias2, B2, node_tile=128, node_splits=2))
    assert out3.shape == (B2, H2)
    assert jnp.allclose(out3, ref2, atol=2e-2, rtol=2e-2), "mismatch vs reference (test 3)"

    print("KERNEL_OK")
</pallas_src>

<mosaic_0001>
module attributes {stable_mosaic.version = 11 : i64} {
  func.func @kernel(%arg0: i32, %arg1: i32, %arg2: memref<1x8xi32, #tpu.memory_space<vmem>>, %arg3: memref<8x4xf32, #tpu.memory_space<vmem>>, %arg4: memref<4x128xf32, #tpu.memory_space<vmem>>, %arg5: memref<1x128xf32, #tpu.memory_space<vmem>>, %arg6: memref<8x128xf32, #tpu.memory_space<vmem>>, %arg7: memref<8x4xf32, #tpu.memory_space<vmem>>, %arg8: memref<8x1xf32, #tpu.memory_space<vmem>>) attributes {dimension_semantics = [#tpu.dimension_semantics<parallel>, #tpu.dimension_semantics<arbitrary>], iteration_bounds = array<i64: 1, 1>, scalar_prefetch = 0 : i64, scratch_operands = 2 : i64, tpu.core_type = #tpu.core_type<tc>, window_params = [{transform_indices = @transform_0, window_bounds = array<i64: 1, 8>}, {transform_indices = @transform_1, window_bounds = array<i64: 8, 4>}, {pipeline_mode = #tpu.pipeline_mode<synchronous>, transform_indices = @transform_2, window_bounds = array<i64: 4, 128>}, {pipeline_mode = #tpu.pipeline_mode<synchronous>, transform_indices = @transform_3, window_bounds = array<i64: 1, 128>}, {transform_indices = @transform_4, window_bounds = array<i64: 8, 128>}]} {
    %c0_i32 = arith.constant 0 : i32
    %0 = arith.cmpi eq, %arg1, %c0_i32 : i32
    %1 = arith.extui %0 : i1 to i32
    %c0_i32_0 = arith.constant 0 : i32
    %2 = arith.cmpi ne, %1, %c0_i32_0 : i32
    scf.if %2 {
      %cst_15 = arith.constant 0.000000e+00 : f32
      %26 = vector.broadcast %cst_15 : f32 to vector<8x4xf32>
      %c0_16 = arith.constant 0 : index
      %c0_17 = arith.constant 0 : index
      %27 = vector.load %arg7[%c0_16, %c0_17] : memref<8x4xf32, #tpu.memory_space<vmem>>, vector<8x4xf32>
      tpu.vector_store %arg7[%c0_16, %c0_17], %26 {strides = array<i32>} : memref<8x4xf32, #tpu.memory_space<vmem>>, vector<8x4xf32>,
      %cst_18 = arith.constant 0.000000e+00 : f32
      %28 = vector.broadcast %cst_18 : f32 to vector<8x1xf32>
      %c0_19 = arith.constant 0 : index
      %c0_20 = arith.constant 0 : index
      %29 = vector.load %arg8[%c0_19, %c0_20] : memref<8x1xf32, #tpu.memory_space<vmem>>, vector<8x1xf32>
      tpu.vector_store %arg8[%c0_19, %c0_20], %28 {strides = array<i32>} : memref<8x1xf32, #tpu.memory_space<vmem>>, vector<8x1xf32>,
    } else {
    }
    %c0 = arith.constant 0 : index
    %c0_1 = arith.constant 0 : index
    %3 = vector.load %arg2[%c0, %c0_1] : memref<1x8xi32, #tpu.memory_space<vmem>>, vector<1x8xi32>
    %c0_2 = arith.constant 0 : index
    %c0_3 = arith.constant 0 : index
    %4 = vector.load %arg3[%c0_2, %c0_3] : memref<8x4xf32, #tpu.memory_space<vmem>>, vector<8x4xf32>
    %c8_i32 = arith.constant 8 : i32
    %5 = arith.muli %arg0, %c8_i32 : i32
    %6 = tpu.iota {dimensions = array<i32: 0>} : vector<8x1xi32>
    %7 = vector.broadcast %5 : i32 to vector<8x1xi32>
    %8 = arith.addi %7, %6 : vector<8x1xi32>
    %9 = vector.broadcast %8 : vector<8x1xi32> to vector<8x8xi32>
    %10 = vector.broadcast %3 : vector<1x8xi32> to vector<8x8xi32>
    %11 = arith.cmpi eq, %9, %10 : vector<8x8xi32>
    %12 = arith.extui %11 : vector<8x8xi1> to vector<8x8xi32>
    %13 = arith.sitofp %12 : vector<8x8xi32> to vector<8x8xf32>
    %c0_4 = arith.constant 0 : index
    %c0_5 = arith.constant 0 : index
    %14 = vector.load %arg7[%c0_4, %c0_5] : memref<8x4xf32, #tpu.memory_space<vmem>>, vector<8x4xf32>
    %cst = arith.constant dense<0.000000e+00> : vector<8x4xf32>
    %15 = tpu.matmul %13, %4, %cst {dimension_numbers = #tpu.dot_dimension_numbers<[1], [0], [0], [1], [0, 0, 1, 1], [], []>} : vector<8x8xf32>, vector<8x4xf32>, vector<8x4xf32> -> vector<8x4xf32>
    %16 = arith.addf %14, %15 : vector<8x4xf32>
    %c0_6 = arith.constant 0 : index
    %c0_7 = arith.constant 0 : index
    %17 = vector.load %arg7[%c0_6, %c0_7] : memref<8x4xf32, #tpu.memory_space<vmem>>, vector<8x4xf32>
    tpu.vector_store %arg7[%c0_6, %c0_7], %16 {strides = array<i32>} : memref<8x4xf32, #tpu.memory_space<vmem>>, vector<8x4xf32>,
    %c0_8 = arith.constant 0 : index
    %c0_9 = arith.constant 0 : index
    %18 = vector.load %arg8[%c0_8, %c0_9] : memref<8x1xf32, #tpu.memory_space<vmem>>, vector<8x1xf32>
    %cst_10 = arith.constant dense<0.000000e+00> : vector<8xf32>
    %19 = vector.multi_reduction <add>, %13, %cst_10 [1] : vector<8x8xf32> to vector<8xf32>
    %20 = vector.shape_cast %19 : vector<8xf32> to vector<8x1xf32>
    %21 = arith.addf %18, %20 : vector<8x1xf32>
    %c0_11 = arith.constant 0 : index
    %c0_12 = arith.constant 0 : index
    %22 = vector.load %arg8[%c0_11, %c0_12] : memref<8x1xf32, #tpu.memory_space<vmem>>, vector<8x1xf32>
    tpu.vector_store %arg8[%c0_11, %c0_12], %21 {strides = array<i32>} : memref<8x1xf32, #tpu.memory_space<vmem>>, vector<8x1xf32>,
    %c0_i32_13 = arith.constant 0 : i32
    %23 = arith.cmpi eq, %arg1, %c0_i32_13 : i32
    %24 = arith.extui %23 : i1 to i32
    %c0_i32_14 = arith.constant 0 : i32
    %25 = arith.cmpi ne, %24, %c0_i32_14 : i32
    scf.if %25 {
      %c0_15 = arith.constant 0 : index
      %c0_16 = arith.constant 0 : index
      %26 = vector.load %arg8[%c0_15, %c0_16] : memref<8x1xf32, #tpu.memory_space<vmem>>, vector<8x1xf32>
      %cst_17 = arith.constant 1.000000e+00 : f32
      %27 = vector.broadcast %cst_17 : f32 to vector<8x1xf32>
      %28 = arith.maximumf %26, %27 : vector<8x1xf32>
      %c0_18 = arith.constant 0 : index
      %c0_19 = arith.constant 0 : index
      %29 = vector.load %arg7[%c0_18, %c0_19] : memref<8x4xf32, #tpu.memory_space<vmem>>, vector<8x4xf32>
      %30 = vector.broadcast %28 : vector<8x1xf32> to vector<8x4xf32>
      %31 = arith.divf %29, %30 : vector<8x4xf32>
      %c0_20 = arith.constant 0 : index
      %c0_21 = arith.constant 0 : index
      %32 = vector.load %arg4[%c0_20, %c0_21] : memref<4x128xf32, #tpu.memory_space<vmem>>, vector<4x128xf32>
      %cst_22 = arith.constant dense<0.000000e+00> : vector<8x128xf32>
      %33 = tpu.matmul %31, %32, %cst_22 {dimension_numbers = #tpu.dot_dimension_numbers<[1], [0], [0], [1], [0, 0, 1, 1], [], []>} : vector<8x4xf32>, vector<4x128xf32>, vector<8x128xf32> -> vector<8x128xf32>
      %c0_23 = arith.constant 0 : index
      %c0_24 = arith.constant 0 : index
      %34 = vector.load %arg5[%c0_23, %c0_24] : memref<1x128xf32, #tpu.memory_space<vmem>>, vector<1x128xf32>
      %35 = vector.broadcast %34 : vector<1x128xf32> to vector<8x128xf32>
      %36 = arith.addf %33, %35 : vector<8x128xf32>
      %cst_25 = arith.constant 0.000000e+00 : f32
      %37 = vector.broadcast %cst_25 : f32 to vector<8x128xf32>
      %38 = arith.maximumf %36, %37 : vector<8x128xf32>
      %c0_26 = arith.constant 0 : index
      %c0_27 = arith.constant 0 : index
      %39 = vector.load %arg6[%c0_26, %c0_27] : memref<8x128xf32, #tpu.memory_space<vmem>>, vector<8x128xf32>
      tpu.vector_store %arg6[%c0_26, %c0_27], %38 {strides = array<i32>} : memref<8x128xf32, #tpu.memory_space<vmem>>, vector<8x128xf32>,
    } else {
    }
    return
  }
  func.func @transform_0(%arg0: i32, %arg1: i32) -> (i32, i32) {
    %c0_i32 = arith.constant 0 : i32
    %c0_i32_0 = arith.constant 0 : i32
    return %c0_i32, %arg1 : i32, i32
  }
  func.func @transform_1(%arg0: i32, %arg1: i32) -> (i32, i32) {
    %c0_i32 = arith.constant 0 : i32
    %c0_i32_0 = arith.constant 0 : i32
    return %arg1, %c0_i32 : i32, i32
  }
  func.func @transform_2(%arg0: i32, %arg1: i32) -> (i32, i32) {
    %c0_i32 = arith.constant 0 : i32
    %c0_i32_0 = arith.constant 0 : i32
    %c0_i32_1 = arith.constant 0 : i32
    return %c0_i32, %c0_i32_0 : i32, i32
  }
  func.func @transform_3(%arg0: i32, %arg1: i32) -> (i32, i32) {
    %c0_i32 = arith.constant 0 : i32
    %c0_i32_0 = arith.constant 0 : i32
    %c0_i32_1 = arith.constant 0 : i32
    return %c0_i32, %c0_i32_0 : i32, i32
  }
  func.func @transform_4(%arg0: i32, %arg1: i32) -> (i32, i32) {
    %c0_i32 = arith.constant 0 : i32
    %c0_i32_0 = arith.constant 0 : i32
    return %arg0, %c0_i32 : i32, i32
  }
}

</mosaic_0001>

<llo_original>
// kernel: tpu_custom_call.1
$region0: #{tpu_custom_call.1}
  #allocation0 [shape = 'u32[]', space=smem, size = 0x4, offset = 0x4, fixed_abs, tag = 'smem constant byte address 0x4 - core index']
  #allocation1 [shape = 'u32[144,128]{1,0:T(1,128)}', space=vmem, size = 0x12000, scoped, tag = 'internal scratch']
  #allocation2 [shape = 'f32[8,4]{1,0:T(8,128)}', space=vmem, size = 0x1000, scoped, tag = 'scratch operand']
  #allocation3 [shape = 'f32[8,1]{1,0:T(8,128)}', space=vmem, size = 0x1000, scoped, tag = 'scratch operand']
  %s0 = inlined_call_operand.vmem [shape: s32[1,8], index: 0, kind: input, shape index: {}]
  %s1 = inlined_call_operand.vmem [shape: f32[8,4], index: 1, kind: input, shape index: {}]
  %s2 = inlined_call_operand.vmem [shape: f32[4,128], index: 2, kind: input, shape index: {}]
  %s3 = inlined_call_operand.vmem [shape: f32[1,128], index: 3, kind: input, shape index: {}]
  %s4 = inlined_call_operand.hbm [shape: f32[8,128], index: 4, kind: output, shape index: {}]
  %s5 = sld [smem:[#allocation0]]
  $region34: #{tpu_custom_call.1} parent=0
    _
  %s7 = ssub.s32 1, %s5
  %s8 = scalar_select 0, %s7, %s5
  $region1: #{tpu_custom_call.1} parent=0
    #allocation4 [shape = 'u8[4096]{0}', space=vmem, size = 0x1000, scoped, tag = 'output window, operand 0, single buffered']
    #allocation5 [shape = 's32[1]{0}', space=sflag, size = 0x4, scoped, tag = 'scoped memory for tpu_custom_call.1']
    %9 = vsyncpa [#allocation5], 0
    // Predicated region
    $region2: #{tpu_custom_call.1} parent=1 // pred_check
      _
    $region3: #{tpu_custom_call.1} parent=1 // pred_check_branch
      %11 = sbr.rel (0) target = $region5
    $region4: #{tpu_custom_call.1} parent=1 // pred_region
      _
    $region5: #{tpu_custom_call.1} parent=1 // pred_fallthru
      _
    // Predicated region
    $region6: #{tpu_custom_call.1} parent=1 // pred_check
      _
    $region7: #{tpu_custom_call.1} parent=1 // pred_check_branch
      %13 = sbr.rel (0) target = $region9
    $region8: #{tpu_custom_call.1} parent=1 // pred_region
      _
    $region9: #{tpu_custom_call.1} parent=1 // pred_fallthru
      _
    // Predicated region
    $region10: #{tpu_custom_call.1} parent=1 // pred_check
      _
    $region11: #{tpu_custom_call.1} parent=1 // pred_check_branch
      %15 = sbr.rel (0) target = $region13
    $region12: #{tpu_custom_call.1} parent=1 // pred_region
      _
    $region13: #{tpu_custom_call.1} parent=1 // pred_fallthru
      _
    // Predicated region
    $region14: #{tpu_custom_call.1} parent=1 // pred_check
      _
    $region15: #{tpu_custom_call.1} parent=1 // pred_check_branch
      %17 = sbr.rel (0) target = $region17
    $region16: #{tpu_custom_call.1} parent=1 // pred_region
      _
    $region17: #{tpu_custom_call.1} parent=1 // pred_fallthru
      _
    %p18 = scmp.eq.s32.totalorder 0, 0
    // Predicated region
    $region18: #{tpu_custom_call.1} parent=1 // pred_check
      %p19 = pneg %p18
    $region19: #{tpu_custom_call.1} parent=1 // pred_check_branch
      %21 = sbr.rel (%p19) target = $region21
    $region20: #{tpu_custom_call.1} parent=1 // pred_region
      %vm22 = vcmask 31744
      %23 = vst.msk [vmem:[#allocation2] sm:$0xff] %vm22, 0.0
      %vm24 = vcmask 7168
      %25 = vst.msk [vmem:[#allocation3] sm:$0xff] %vm24, 0.0
    $region21: #{tpu_custom_call.1} parent=1 // pred_fallthru
      _
    %v26 = vld [vmem:[%s0] sm:$0x1]
    %v27 = vld [vmem:[%s1] sm:$0xff]
    %s28 = smul.u32 0, 8
    %v29 = vlaneseq
    %v30 = vshrl.u32 %v29, 7
    %v31 = vstv %s28
    %v32 = vadd.s32 %v31, %v30
    %v33 = vlaneseq
    %v34 = vshrl.u32 %v33, 7
    %v35 = vsub.s32 0, %v34
    %v36 = vrot.slane %v26, %v35
    %vm37 = vcmp.eq.s32.totalorder %v32, %v36
    %v38 = vsel %vm37, 1, 0
    %v39 = vcvt.s32.f32 %v38
    %v40 = vld [vmem:[#allocation2] sm:$0xff]
    %vm41 = vcmask 64512
    %v43 = vsel %vm41, %v39, 0
    %45 = vmatprep.subr.mxu0 0.0
    %46 = vmatpush1.msra.mxu0 %v27
    %47 = vmatprep.subr.mxu0 0.0
    %48 = vmatpush1.msra.mxu0 0.0
    %49 = vmatprep.subr.mxu0 0.0
    %50 = vmatpush1.msra.mxu0 0.0
    %51 = vmatprep.subr.mxu0 0.0
    %52 = vmatpush1.msra.mxu0 0.0
    %53 = vmatprep.subr.mxu0 0.0
    %54 = vmatpush1.msra.mxu0 0.0
    %55 = vmatprep.subr.mxu0 0.0
    %56 = vmatpush1.msra.mxu0 0.0
    %57 = vmatprep.subr.mxu0 0.0
    %58 = vmatpush1.msra.mxu0 0.0
    %59 = vmatprep.subr.mxu0 0.0
    %60 = vmatpush1.msra.mxu0 0.0
    %61 = vmatprep.subr.mxu0 0.0
    %62 = vmatpush1.msra.mxu0 0.0
    %63 = vmatprep.subr.mxu0 0.0
    %64 = vmatpush1.msra.mxu0 0.0
    %65 = vmatprep.subr.mxu0 0.0
    %66 = vmatpush1.msra.mxu0 0.0
    %67 = vmatprep.subr.mxu0 0.0
    %68 = vmatpush1.msra.mxu0 0.0
    %69 = vmatprep.subr.mxu0 0.0
    %70 = vmatpush1.msra.mxu0 0.0
    %71 = vmatprep.subr.mxu0 0.0
    %72 = vmatpush1.msra.mxu0 0.0
    %73 = vmatprep.subr.mxu0 0.0
    %74 = vmatpush1.msra.mxu0 0.0
    %75 = vmatprep.subr.mxu0 0.0
    %76 = vmatpush1.msra.mxu0 0.0
    %77 = vmatprep.subr.mxu0 0.0
    %78 = vmatpush1.msra.mxu0 0.0
    %79 = vmatprep.subr.mxu0 0.0
    %80 = vmatpush1.msra.mxu0 0.0
    %81 = vmatprep.subr.mxu0 0.0
    %82 = vmatpush1.msra.mxu0 0.0
    %83 = vmatprep.subr.mxu0 0.0
    %84 = vmatpush1.msra.mxu0 0.0
    %85 = vmatprep.subr.mxu0 0.0
    %86 = vmatpush1.msra.mxu0 0.0
    %87 = vmatprep.subr.mxu0 0.0
    %88 = vmatpush1.msra.mxu0 0.0
    %89 = vmatprep.subr.mxu0 0.0
    %90 = vmatpush1.msra.mxu0 0.0
    %91 = vmatprep.subr.mxu0 0.0
    %92 = vmatpush1.msra.mxu0 0.0
    %93 = vmatprep.subr.mxu0 0.0
    %94 = vmatpush1.msra.mxu0 0.0
    %95 = vmatprep.subr.mxu0 0.0
    %96 = vmatpush1.msra.mxu0 0.0
    %97 = vmatprep.subr.mxu0 0.0
    %98 = vmatpush1.msra.mxu0 0.0
    %99 = vmatprep.subr.mxu0 0.0
    %100 = vmatpush1.msra.mxu0 0.0
    %101 = vmatprep.subr.mxu0 0.0
    %102 = vmatpush1.msra.mxu0 0.0
    %103 = vmatprep.subr.mxu0 0.0
    %104 = vmatpush1.msra.mxu0 0.0
    %105 = vmatprep.subr.mxu0 0.0
    %106 = vmatpush1.msra.mxu0 0.0
    %107 = vmatprep.subr.mxu0 0.0
    %108 = vmatpush1.msra.mxu0 0.0
    %109 = vmatprep.mubr.f32.mxu0 0.0
    %110 = vmatmul.mubr.f32.gmra.mrb[0].mxu0 %v43
    %v111 = vpop.f32.mrb[0].mxu0
    %v112 = vadd.f32 0.0, %v111
    %v113 = vpop.f32.mrb[0].mxu0
    %114 = vdwg.mxu0
    %v115 = vadd.f32 %v40, %v112
    %vm116 = vcmask 31744
    %117 = vst.msk [vmem:[#allocation2] sm:$0xff] %vm116, %v115
    %v118 = vld [vmem:[#allocation3] sm:$0xff]
    %v119 = vsel %vm41, %v39, 0.0
    %120 = vadd.xlane.f32.xlu0 %v119
    %v121 = vpop.xlane.xlu0 %120
    %v122 = vadd.f32 %v118, %v121
    %vm123 = vcmask 7168
    %124 = vst.msk [vmem:[#allocation3] sm:$0xff] %vm123, %v122
    // Predicated region
    $region22: #{tpu_custom_call.1} parent=1 // pred_check
      %p125 = pneg %p18
    $region23: #{tpu_custom_call.1} parent=1 // pred_check_branch
      %127 = sbr.rel (%p125) target = $region25
    $region24: #{tpu_custom_call.1} parent=1 // pred_region
      %v128 = vld [vmem:[#allocation3] sm:$0xff]
      %v129 = vmax.f32 %v128, 1.0
      %v130 = vld [vmem:[#allocation2] sm:$0xff]
      %132 = vset.pattern.permute.xlu0 0
      %133 = vperm.xlu0 %132, %v129
      %v134 = vpop.permute.xlu0 %133
      %v136 = vrcp.pop %v134
      %v137 = vmul.f32 %v130, %v136
      %v138 = vld [vmem:[%s2] sm:$0xf]
      %v139 = vld [vmem:[%s3] sm:$0x1]
      %v141 = vlaneseq
      %v142 = vshrl.u32 %v141, 7
      %v143 = vsub.s32 0, %v142
      %v144 = vrot.slane %v139, %v143
      %v147 = vsel %vm116, %v137, 0
      %vm149 = vcmask 1043456
      %v151 = vsel %vm149, %v138, 0
      %153 = vmatprep.subr.mxu0 0.0
      %154 = vmatpush1.msra.mxu0 %v151
      %155 = vmatprep.subr.mxu0 0.0
      %156 = vmatpush1.msra.mxu0 0.0
      %157 = vmatprep.subr.mxu0 0.0
      %158 = vmatpush1.msra.mxu0 0.0
      %159 = vmatprep.subr.mxu0 0.0
      %160 = vmatpush1.msra.mxu0 0.0
      %161 = vmatprep.subr.mxu0 0.0
      %162 = vmatpush1.msra.mxu0 0.0
      %163 = vmatprep.subr.mxu0 0.0
      %164 = vmatpush1.msra.mxu0 0.0
      %165 = vmatprep.subr.mxu0 0.0
      %166 = vmatpush1.msra.mxu0 0.0
      %167 = vmatprep.subr.mxu0 0.0
      %168 = vmatpush1.msra.mxu0 0.0
      %169 = vmatprep.subr.mxu0 0.0
      %170 = vmatpush1.msra.mxu0 0.0
      %171 = vmatprep.subr.mxu0 0.0
      %172 = vmatpush1.msra.mxu0 0.0
      %173 = vmatprep.subr.mxu0 0.0
      %174 = vmatpush1.msra.mxu0 0.0
      %175 = vmatprep.subr.mxu0 0.0
      %176 = vmatpush1.msra.mxu0 0.0
      %177 = vmatprep.subr.mxu0 0.0
      %178 = vmatpush1.msra.mxu0 0.0
      %179 = vmatprep.subr.mxu0 0.0
      %180 = vmatpush1.msra.mxu0 0.0
      %181 = vmatprep.subr.mxu0 0.0
      %182 = vmatpush1.msra.mxu0 0.0
      %183 = vmatprep.subr.mxu0 0.0
      %184 = vmatpush1.msra.mxu0 0.0
      %185 = vmatprep.subr.mxu0 0.0
      %186 = vmatpush1.msra.mxu0 0.0
      %187 = vmatprep.subr.mxu0 0.0
      %188 = vmatpush1.msra.mxu0 0.0
      %189 = vmatprep.subr.mxu0 0.0
      %190 = vmatpush1.msra.mxu0 0.0
      %191 = vmatprep.subr.mxu0 0.0
      %192 = vmatpush1.msra.mxu0 0.0
      %193 = vmatprep.subr.mxu0 0.0
      %194 = vmatpush1.msra.mxu0 0.0
      %195 = vmatprep.subr.mxu0 0.0
      %196 = vmatpush1.msra.mxu0 0.0
      %197 = vmatprep.subr.mxu0 0.0
      %198 = vmatpush1.msra.mxu0 0.0
      %199 = vmatprep.subr.mxu0 0.0
      %200 = vmatpush1.msra.mxu0 0.0
      %201 = vmatprep.subr.mxu0 0.0
      %202 = vmatpush1.msra.mxu0 0.0
      %203 = vmatprep.subr.mxu0 0.0
      %204 = vmatpush1.msra.mxu0 0.0
      %205 = vmatprep.subr.mxu0 0.0
      %206 = vmatpush1.msra.mxu0 0.0
      %207 = vmatprep.subr.mxu0 0.0
      %208 = vmatpush1.msra.mxu0 0.0
      %209 = vmatprep.subr.mxu0 0.0
      %210 = vmatpush1.msra.mxu0 0.0
      %211 = vmatprep.subr.mxu0 0.0
      %212 = vmatpush1.msra.mxu0 0.0
      %213 = vmatprep.subr.mxu0 0.0
      %214 = vmatpush1.msra.mxu0 0.0
      %215 = vmatprep.subr.mxu0 0.0
      %216 = vmatpush1.msra.mxu0 0.0
      %217 = vmatprep.mubr.f32.mxu0 0.0
      %218 = vmatmul.mubr.f32.gmra.mrb[0].mxu0 %v147
      %v219 = vpop.f32.mrb[0].mxu0
      %v220 = vadd.f32 %v144, %v219
      %v221 = vpop.f32.mrb[0].mxu0
      %222 = vdwg.mxu0
      %v223 = vmax.f32 %v220, 0.0
      %224 = vst [vmem:[#allocation4] sm:$0xff] %v223
    $region25: #{tpu_custom_call.1} parent=1 // pred_fallthru
      _
    // Predicated region
    $region26: #{tpu_custom_call.1} parent=1 // pred_check
      _
    $region27: #{tpu_custom_call.1} parent=1 // pred_check_branch
      %226 = sbr.rel (0) target = $region29
    $region28: #{tpu_custom_call.1} parent=1 // pred_region
      %s228 = ssub.s32 128, 128
      %229 = vsyncadd [#allocation5], %s228
      %s231 = sshll.u32 [#allocation4], 4
      %s232 = int_to_ptr.vmem [resolvable:$true] %s231
      %234 = dma.vmem_to_hbm [thread:$0]  %s232, 128, %s4, [#allocation5]
    $region29: #{tpu_custom_call.1} parent=1 // pred_fallthru
      _
    // Predicated region
    $region30: #{tpu_custom_call.1} parent=1 // pred_check
      _
    $region31: #{tpu_custom_call.1} parent=1 // pred_check_branch
      %236 = sbr.rel (0) target = $region33
    $region32: #{tpu_custom_call.1} parent=1 // pred_region
      %237 = dma.done [#allocation5], 128
    $region33: #{tpu_custom_call.1} parent=1 // pred_fallthru
      _
    %238 = vsyncpa [#allocation5], 1

</llo_original>
